<compile_context>
chip_gen: v7x
topology: tpu7x:2x2x1
jax: 0.10.0
libtpu: 0.0.40
codegen_flags: <defaults>
</compile_context>

<pallas_src>
import functools

import jax
import jax.numpy as jnp
from jax.experimental import pallas as pl
from jax.experimental.pallas import tpu as pltpu

_ALIGN = 16  # bf16 sublane tiling multiple for the token (sublane) axis


def _mlp_kernel(x_ref, w1_ref, b1_ref, w2_ref, b2_ref, o_ref, *, approx_gelu):
    # x_ref : (tm, D_in)      tile of tokens (caller dtype; bf16 accepted natively)
    # w1_ref: (D_in, D_hid)   fc1 weight, bf16, resident
    # b1_ref: (1, D_hid)      fc1 bias, f32, resident
    # w2_ref: (D_hid, D_out)  fc2 weight, bf16, resident
    # b2_ref: (1, D_out)      fc2 bias, f32, resident
    # o_ref : (tm, D_out)
    x = x_ref[...].astype(jnp.bfloat16)  # no-op if activations already bf16

    # fc1: bf16 MXU inputs, f32 accumulation; bias add in f32.
    h = jnp.dot(x, w1_ref[...], preferred_element_type=jnp.float32) + b1_ref[...]

    if approx_gelu:
        # tanh-approx GELU: the transcendental runs on the EUP (free slot).
        c = 0.7978845608028654  # sqrt(2/pi)
        h = 0.5 * h * (1.0 + jnp.tanh(c * (h + 0.044715 * (h * h * h))))
    else:
        # exact erf-GELU (torch nn.GELU default), f32.
        h = 0.5 * h * (1.0 + jax.lax.erf(h * 0.7071067811865476))

    # nn.Dropout(p=0.0) is the identity (module default).
    # TODO(synk): dropout with p>0 in training mode needs pltpu.prng_* masking.

    # fc2: bf16 MXU inputs, f32 accumulation; bias add in f32.
    o = jnp.dot(h.astype(jnp.bfloat16), w2_ref[...],
                preferred_element_type=jnp.float32) + b2_ref[...]

    o_ref[...] = o.astype(o_ref.dtype)


def _round_up(x, m):
    return (x + m - 1) // m * m


def _cdiv(a, b):
    return -(-a // b)


def _tpu_defaults():
    """Returns (preferred token tile, usable VMEM bytes, has-two-tensorcores)."""
    vmem_cap = None
    try:
        vmem_cap = int(pltpu.get_tpu_info().vmem_capacity_bytes)
    except Exception:
        vmem_cap = None
    kind = ""
    try:
        kind = jax.devices()[0].device_kind.lower()
    except Exception:
        pass
    two_tc = "v7" in kind
    if vmem_cap is None:
        if two_tc:
            vmem_cap = 64 * 1024 * 1024            # v7x: 64 MiB per TC
        elif "v5" in kind or "v6" in kind:
            vmem_cap = 128 * 1024 * 1024           # v5e/v5p/v6e: 128 MiB
        else:
            vmem_cap = 64 * 1024 * 1024            # conservative default
    usable = vmem_cap - vmem_cap // 8              # headroom for compiler scratch
    tm = 512 if (vmem_cap >= 128 * 1024 * 1024 and not two_tc) else 256
    return tm, usable, two_tc


def _vmem_estimate(tm_eff, d_in, d_hid, d_out, x_bytes, o_bytes, w_bufs):
    return (2 * tm_eff * d_in * x_bytes                  # streamed x tile (double-buffered)
            + 2 * tm_eff * d_out * o_bytes               # streamed out tile (double-buffered)
            + w_bufs * (d_in * d_hid + d_hid * d_out) * 2  # resident bf16 weights
            + w_bufs * (d_hid + d_out) * 4               # resident f32 biases
            + tm_eff * d_hid * 4                         # f32 hidden intermediate
            + tm_eff * max(d_hid, d_out) * 4)            # epilogue temporaries


def _resident_spec(shape, single_buffer):
    index_map = lambda i: (0,) * len(shape)
    if single_buffer:
        return pl.BlockSpec(shape, index_map, pipeline_mode=pl.Buffered(1))
    return pl.BlockSpec(shape, index_map)


@functools.partial(
    jax.jit,
    static_argnames=("tm", "vmem_usable", "two_tc", "approx_gelu",
                     "single_buffer_weights"))
def _mlp_forward_impl(x, w1, b1, w2, b2, *, tm, vmem_usable, two_tc,
                      approx_gelu, single_buffer_weights):
    B, S, D_in = x.shape
    D_hid = w1.shape[1]
    D_out = w2.shape[1]
    M = B * S
    w_bufs = 1 if single_buffer_weights else 2

    # Token tile: large by default, clamped (to a 16-row multiple) for tiny
    # inputs.  On a two-TensorCore chip, never leave one core idle because the
    # whole problem fits in a single block.
    tm_eff = min(_round_up(tm, _ALIGN), _round_up(M, _ALIGN))
    if two_tc and _cdiv(M, tm_eff) < 2 and M >= 2 * _ALIGN:
        tm_eff = _round_up(_cdiv(M, 2), _ALIGN)
    # Shrink the tile if the working set would not fit the usable VMEM budget.
    while (_vmem_estimate(tm_eff, D_in, D_hid, D_out, x.dtype.itemsize,
                          x.dtype.itemsize, w_bufs) > vmem_usable
           and tm_eff > _ALIGN):
        tm_eff = max(_ALIGN, _round_up(tm_eff // 2, _ALIGN))
    grid_m = _cdiv(M, tm_eff)
    # TODO(synk): if resident bf16 weights alone exceed the budget (ViT-g scale
    # on v7x), add an "arbitrary" D_hid-chunk grid axis with an f32 accumulator.

    x2d = x.reshape(M, D_in)  # no padding: Pallas clips the ragged last block

    # Weights shipped as bf16 (halves resident VMEM + HBM traffic); biases f32.
    w1b = w1.astype(jnp.bfloat16)
    w2b = w2.astype(jnp.bfloat16)
    b1_2d = b1.reshape(1, D_hid).astype(jnp.float32)
    b2_2d = b2.reshape(1, D_out).astype(jnp.float32)

    est = _vmem_estimate(tm_eff, D_in, D_hid, D_out, x.dtype.itemsize,
                         x.dtype.itemsize, w_bufs)
    vmem_limit = int(min(max(est + (4 << 20), 16 << 20), vmem_usable))

    out2d = pl.pallas_call(
        functools.partial(_mlp_kernel, approx_gelu=approx_gelu),
        out_shape=jax.ShapeDtypeStruct((M, D_out), x.dtype),
        grid_spec=pltpu.PrefetchScalarGridSpec(
            num_scalar_prefetch=0,
            grid=(grid_m,),
            in_specs=[
                pl.BlockSpec((tm_eff, D_in), lambda i: (i, 0)),         # x tile
                _resident_spec((D_in, D_hid), single_buffer_weights),   # w1
                _resident_spec((1, D_hid), single_buffer_weights),      # b1
                _resident_spec((D_hid, D_out), single_buffer_weights),  # w2
                _resident_spec((1, D_out), single_buffer_weights),      # b2
            ],
            out_specs=pl.BlockSpec((tm_eff, D_out), lambda i: (i, 0)),
        ),
        compiler_params=pltpu.CompilerParams(
            dimension_semantics=("parallel",),
            vmem_limit_bytes=vmem_limit,
        ),
    )(x2d, w1b, b1_2d, w2b, b2_2d)

    return out2d.reshape(B, S, D_out)


def mlp_forward(x, w1, b1, w2, b2, *, tm=None, approx_gelu=False):
    """ViT MLP forward.  x: (B, S, D_in); w1: (D_in, D_hid); b1: (D_hid,);
    w2: (D_hid, D_out); b2: (D_out,).

    Precision contract: both matmuls feed the MXU in bf16 with f32
    accumulation; GELU / bias adds stay f32.  approx_gelu=True switches the
    erf-GELU to the tanh approximation (EUP-routed, faster on v6e/v7x) at the
    cost of exact torch nn.GELU parity.
    """
    tm_default, vmem_usable, two_tc = _tpu_defaults()
    if tm is None:
        tm = tm_default
    kwargs = dict(tm=int(tm), vmem_usable=int(vmem_usable), two_tc=bool(two_tc),
                  approx_gelu=bool(approx_gelu))
    try:
        return _mlp_forward_impl(x, w1, b1, w2, b2,
                                 single_buffer_weights=True, **kwargs)
    except Exception:
        # Safety net: if this jax build rejects pipeline_mode=pl.Buffered(1),
        # fall back to default double-buffering of the resident operands.
        return _mlp_forward_impl(x, w1, b1, w2, b2,
                                 single_buffer_weights=False, **kwargs)


def _reference(x, w1, b1, w2, b2):
    h = jnp.einsum("bsd,dh->bsh", x, w1) + b1
    h = 0.5 * h * (1.0 + jax.lax.erf(h / jnp.sqrt(2.0)))
    return jnp.einsum("bsh,ho->bso", h, w2) + b2


if __name__ == "__main__":
    # Small shapes consistent with the module: batch=2, seq=8 tokens,
    # in_features=32, hidden_features=64, out_features=32.
    B, S = 2, 8
    D_in, D_hid, D_out = 32, 64, 32

    key = jax.random.PRNGKey(0)
    kx, kw1, kb1, kw2, kb2 = jax.random.split(key, 5)

    x = jax.random.normal(kx, (B, S, D_in), dtype=jnp.float32)
    # Deterministic synthetic parameters (trunc-normal-ish init scale).
    w1 = jax.random.normal(kw1, (D_in, D_hid), dtype=jnp.float32) * 0.02
    b1 = jax.random.normal(kb1, (D_hid,), dtype=jnp.float32) * 0.02
    w2 = jax.random.normal(kw2, (D_hid, D_out), dtype=jnp.float32) * 0.02
    b2 = jax.random.normal(kb2, (D_out,), dtype=jnp.float32) * 0.02

    out = mlp_forward(x, w1, b1, w2, b2)
    jax.block_until_ready(out)

    ref = _reference(x, w1, b1, w2, b2)
    assert out.shape == (B, S, D_out)
    # bf16 MXU inputs (f32 accumulation) -> slightly looser tolerance vs f32 ref.
    assert jnp.allclose(out, ref, atol=1e-2, rtol=1e-2), float(
        jnp.max(jnp.abs(out - ref))
    )

    print("KERNEL_OK")
</pallas_src>

<mosaic_0001>
module attributes {stable_mosaic.version = 11 : i64} {
  func.func @_mlp_kernel(%arg0: i32, %arg1: memref<16x32xf32, #tpu.memory_space<vmem>>, %arg2: memref<32x64xbf16, #tpu.memory_space<vmem>>, %arg3: memref<1x64xf32, #tpu.memory_space<vmem>>, %arg4: memref<64x32xbf16, #tpu.memory_space<vmem>>, %arg5: memref<1x32xf32, #tpu.memory_space<vmem>>, %arg6: memref<16x32xf32, #tpu.memory_space<vmem>>) attributes {dimension_semantics = [#tpu.dimension_semantics<parallel>], iteration_bounds = array<i64: 1>, scalar_prefetch = 0 : i64, scratch_operands = 0 : i64, tpu.core_type = #tpu.core_type<tc>, window_params = [{transform_indices = @transform_0, window_bounds = array<i64: 16, 32>}, {pipeline_mode = #tpu.pipeline_mode<synchronous>, transform_indices = @transform_1, window_bounds = array<i64: 32, 64>}, {pipeline_mode = #tpu.pipeline_mode<synchronous>, transform_indices = @transform_2, window_bounds = array<i64: 1, 64>}, {pipeline_mode = #tpu.pipeline_mode<synchronous>, transform_indices = @transform_3, window_bounds = array<i64: 64, 32>}, {pipeline_mode = #tpu.pipeline_mode<synchronous>, transform_indices = @transform_4, window_bounds = array<i64: 1, 32>}, {transform_indices = @transform_5, window_bounds = array<i64: 16, 32>}]} {
    %c0 = arith.constant 0 : index
    %c0_0 = arith.constant 0 : index
    %0 = vector.load %arg1[%c0, %c0_0] : memref<16x32xf32, #tpu.memory_space<vmem>>, vector<16x32xf32>
    %1 = arith.truncf %0 : vector<16x32xf32> to vector<16x32xbf16>
    %c0_1 = arith.constant 0 : index
    %c0_2 = arith.constant 0 : index
    %2 = vector.load %arg2[%c0_1, %c0_2] : memref<32x64xbf16, #tpu.memory_space<vmem>>, vector<32x64xbf16>
    %cst = arith.constant dense<0.000000e+00> : vector<16x64xf32>
    %3 = tpu.matmul %1, %2, %cst {dimension_numbers = #tpu.dot_dimension_numbers<[1], [0], [0], [1], [0, 0, 1, 1], [], []>} : vector<16x32xbf16>, vector<32x64xbf16>, vector<16x64xf32> -> vector<16x64xf32>
    %c0_3 = arith.constant 0 : index
    %c0_4 = arith.constant 0 : index
    %4 = vector.load %arg3[%c0_3, %c0_4] : memref<1x64xf32, #tpu.memory_space<vmem>>, vector<1x64xf32>
    %5 = vector.broadcast %4 : vector<1x64xf32> to vector<16x64xf32>
    %6 = arith.addf %3, %5 : vector<16x64xf32>
    %cst_5 = arith.constant 5.000000e-01 : f32
    %7 = vector.broadcast %cst_5 : f32 to vector<16x64xf32>
    %8 = arith.mulf %7, %6 : vector<16x64xf32>
    %cst_6 = arith.constant 0.707106769 : f32
    %9 = vector.broadcast %cst_6 : f32 to vector<16x64xf32>
    %10 = arith.mulf %6, %9 : vector<16x64xf32>
    %11 = math.erf %10 : vector<16x64xf32>
    %cst_7 = arith.constant 1.000000e+00 : f32
    %12 = vector.broadcast %cst_7 : f32 to vector<16x64xf32>
    %13 = arith.addf %12, %11 : vector<16x64xf32>
    %14 = arith.mulf %8, %13 : vector<16x64xf32>
    %15 = arith.truncf %14 : vector<16x64xf32> to vector<16x64xbf16>
    %c0_8 = arith.constant 0 : index
    %c0_9 = arith.constant 0 : index
    %16 = vector.load %arg4[%c0_8, %c0_9] : memref<64x32xbf16, #tpu.memory_space<vmem>>, vector<64x32xbf16>
    %cst_10 = arith.constant dense<0.000000e+00> : vector<16x32xf32>
    %17 = tpu.matmul %15, %16, %cst_10 {dimension_numbers = #tpu.dot_dimension_numbers<[1], [0], [0], [1], [0, 0, 1, 1], [], []>} : vector<16x64xbf16>, vector<64x32xbf16>, vector<16x32xf32> -> vector<16x32xf32>
    %c0_11 = arith.constant 0 : index
    %c0_12 = arith.constant 0 : index
    %18 = vector.load %arg5[%c0_11, %c0_12] : memref<1x32xf32, #tpu.memory_space<vmem>>, vector<1x32xf32>
    %19 = vector.broadcast %18 : vector<1x32xf32> to vector<16x32xf32>
    %20 = arith.addf %17, %19 : vector<16x32xf32>
    %c0_13 = arith.constant 0 : index
    %c0_14 = arith.constant 0 : index
    %21 = vector.load %arg6[%c0_13, %c0_14] : memref<16x32xf32, #tpu.memory_space<vmem>>, vector<16x32xf32>
    tpu.vector_store %arg6[%c0_13, %c0_14], %20 {strides = array<i32>} : memref<16x32xf32, #tpu.memory_space<vmem>>, vector<16x32xf32>,
    return
  }
  func.func @transform_0(%arg0: i32) -> (i32, i32) {
    %c0_i32 = arith.constant 0 : i32
    %c0_i32_0 = arith.constant 0 : i32
    return %arg0, %c0_i32 : i32, i32
  }
  func.func @transform_1(%arg0: i32) -> (i32, i32) {
    %c0_i32 = arith.constant 0 : i32
    %c0_i32_0 = arith.constant 0 : i32
    %c0_i32_1 = arith.constant 0 : i32
    return %c0_i32, %c0_i32_0 : i32, i32
  }
  func.func @transform_2(%arg0: i32) -> (i32, i32) {
    %c0_i32 = arith.constant 0 : i32
    %c0_i32_0 = arith.constant 0 : i32
    %c0_i32_1 = arith.constant 0 : i32
    return %c0_i32, %c0_i32_0 : i32, i32
  }
  func.func @transform_3(%arg0: i32) -> (i32, i32) {
    %c0_i32 = arith.constant 0 : i32
    %c0_i32_0 = arith.constant 0 : i32
    %c0_i32_1 = arith.constant 0 : i32
    return %c0_i32, %c0_i32_0 : i32, i32
  }
  func.func @transform_4(%arg0: i32) -> (i32, i32) {
    %c0_i32 = arith.constant 0 : i32
    %c0_i32_0 = arith.constant 0 : i32
    %c0_i32_1 = arith.constant 0 : i32
    return %c0_i32, %c0_i32_0 : i32, i32
  }
  func.func @transform_5(%arg0: i32) -> (i32, i32) {
    %c0_i32 = arith.constant 0 : i32
    %c0_i32_0 = arith.constant 0 : i32
    return %arg0, %c0_i32 : i32, i32
  }
}

module attributes {stable_mosaic.version = 11 : i64} {
  func.func @_mlp_kernel(%arg0: i32, %arg1: memref<16x32xf32, #tpu.memory_space<vmem>>, %arg2: memref<32x64xbf16, #tpu.memory_space<vmem>>, %arg3: memref<1x64xf32, #tpu.memory_space<vmem>>, %arg4: memref<64x32xbf16, #tpu.memory_space<vmem>>, %arg5: memref<1x32xf32, #tpu.memory_space<vmem>>, %arg6: memref<16x32xf32, #tpu.memory_space<vmem>>) attributes {dimension_semantics = [#tpu.dimension_semantics<parallel>], iteration_bounds = array<i64: 1>, scalar_prefetch = 0 : i64, scratch_operands = 0 : i64, tpu.core_type = #tpu.core_type<tc>, window_params = [{transform_indices = @transform_0, window_bounds = array<i64: 16, 32>}, {pipeline_mode = #tpu.pipeline_mode<synchronous>, transform_indices = @transform_1, window_bounds = array<i64: 32, 64>}, {pipeline_mode = #tpu.pipeline_mode<synchronous>, transform_indices = @transform_2, window_bounds = array<i64: 1, 64>}, {pipeline_mode = #tpu.pipeline_mode<synchronous>, transform_indices = @transform_3, window_bounds = array<i64: 64, 32>}, {pipeline_mode = #tpu.pipeline_mode<synchronous>, transform_indices = @transform_4, window_bounds = array<i64: 1, 32>}, {transform_indices = @transform_5, window_bounds = array<i64: 16, 32>}]} {
    %c0 = arith.constant 0 : index
    %c0_0 = arith.constant 0 : index
    %0 = vector.load %arg1[%c0, %c0_0] : memref<16x32xf32, #tpu.memory_space<vmem>>, vector<16x32xf32>
    %1 = arith.truncf %0 : vector<16x32xf32> to vector<16x32xbf16>
    %c0_1 = arith.constant 0 : index
    %c0_2 = arith.constant 0 : index
    %2 = vector.load %arg2[%c0_1, %c0_2] : memref<32x64xbf16, #tpu.memory_space<vmem>>, vector<32x64xbf16>
    %cst = arith.constant dense<0.000000e+00> : vector<16x64xf32>
    %3 = tpu.matmul %1, %2, %cst {dimension_numbers = #tpu.dot_dimension_numbers<[1], [0], [0], [1], [0, 0, 1, 1], [], []>} : vector<16x32xbf16>, vector<32x64xbf16>, vector<16x64xf32> -> vector<16x64xf32>
    %c0_3 = arith.constant 0 : index
    %c0_4 = arith.constant 0 : index
    %4 = vector.load %arg3[%c0_3, %c0_4] : memref<1x64xf32, #tpu.memory_space<vmem>>, vector<1x64xf32>
    %5 = vector.broadcast %4 : vector<1x64xf32> to vector<16x64xf32>
    %6 = arith.addf %3, %5 : vector<16x64xf32>
    %cst_5 = arith.constant 5.000000e-01 : f32
    %7 = vector.broadcast %cst_5 : f32 to vector<16x64xf32>
    %8 = arith.mulf %7, %6 : vector<16x64xf32>
    %cst_6 = arith.constant 0.707106769 : f32
    %9 = vector.broadcast %cst_6 : f32 to vector<16x64xf32>
    %10 = arith.mulf %6, %9 : vector<16x64xf32>
    %11 = math.erf %10 : vector<16x64xf32>
    %cst_7 = arith.constant 1.000000e+00 : f32
    %12 = vector.broadcast %cst_7 : f32 to vector<16x64xf32>
    %13 = arith.addf %12, %11 : vector<16x64xf32>
    %14 = arith.mulf %8, %13 : vector<16x64xf32>
    %15 = arith.truncf %14 : vector<16x64xf32> to vector<16x64xbf16>
    %c0_8 = arith.constant 0 : index
    %c0_9 = arith.constant 0 : index
    %16 = vector.load %arg4[%c0_8, %c0_9] : memref<64x32xbf16, #tpu.memory_space<vmem>>, vector<64x32xbf16>
    %cst_10 = arith.constant dense<0.000000e+00> : vector<16x32xf32>
    %17 = tpu.matmul %15, %16, %cst_10 {dimension_numbers = #tpu.dot_dimension_numbers<[1], [0], [0], [1], [0, 0, 1, 1], [], []>} : vector<16x64xbf16>, vector<64x32xbf16>, vector<16x32xf32> -> vector<16x32xf32>
    %c0_11 = arith.constant 0 : index
    %c0_12 = arith.constant 0 : index
    %18 = vector.load %arg5[%c0_11, %c0_12] : memref<1x32xf32, #tpu.memory_space<vmem>>, vector<1x32xf32>
    %19 = vector.broadcast %18 : vector<1x32xf32> to vector<16x32xf32>
    %20 = arith.addf %17, %19 : vector<16x32xf32>
    %c0_13 = arith.constant 0 : index
    %c0_14 = arith.constant 0 : index
    %21 = vector.load %arg6[%c0_13, %c0_14] : memref<16x32xf32, #tpu.memory_space<vmem>>, vector<16x32xf32>
    tpu.vector_store %arg6[%c0_13, %c0_14], %20 {strides = array<i32>} : memref<16x32xf32, #tpu.memory_space<vmem>>, vector<16x32xf32>,
    return
  }
  func.func @transform_0(%arg0: i32) -> (i32, i32) {
    %c0_i32 = arith.constant 0 : i32
    %c0_i32_0 = arith.constant 0 : i32
    return %arg0, %c0_i32 : i32, i32
  }
  func.func @transform_1(%arg0: i32) -> (i32, i32) {
    %c0_i32 = arith.constant 0 : i32
    %c0_i32_0 = arith.constant 0 : i32
    %c0_i32_1 = arith.constant 0 : i32
    return %c0_i32, %c0_i32_0 : i32, i32
  }
  func.func @transform_2(%arg0: i32) -> (i32, i32) {
    %c0_i32 = arith.constant 0 : i32
    %c0_i32_0 = arith.constant 0 : i32
    %c0_i32_1 = arith.constant 0 : i32
    return %c0_i32, %c0_i32_0 : i32, i32
  }
  func.func @transform_3(%arg0: i32) -> (i32, i32) {
    %c0_i32 = arith.constant 0 : i32
    %c0_i32_0 = arith.constant 0 : i32
    %c0_i32_1 = arith.constant 0 : i32
    return %c0_i32, %c0_i32_0 : i32, i32
  }
  func.func @transform_4(%arg0: i32) -> (i32, i32) {
    %c0_i32 = arith.constant 0 : i32
    %c0_i32_0 = arith.constant 0 : i32
    %c0_i32_1 = arith.constant 0 : i32
    return %c0_i32, %c0_i32_0 : i32, i32
  }
  func.func @transform_5(%arg0: i32) -> (i32, i32) {
    %c0_i32 = arith.constant 0 : i32
    %c0_i32_0 = arith.constant 0 : i32
    return %arg0, %c0_i32 : i32, i32
  }
}

</mosaic_0001>

<llo_original>
// kernel: _mlp_forward_impl.1
$region0: #{_mlp_forward_impl.1}
  #allocation0 [shape = 'u32[]', space=smem, size = 0x4, offset = 0x4, fixed_abs, tag = 'smem constant byte address 0x4 - core index']
  #allocation1 [shape = 'u32[144,128]{1,0:T(1,128)}', space=vmem, size = 0x12000, scoped, tag = 'internal scratch']
  %s0 = inlined_call_operand.vmem [shape: f32[16,32], index: 0, kind: input, shape index: {}]
  %s1 = inlined_call_operand.vmem [shape: bf16[32,64], index: 1, kind: input, shape index: {}]
  %s2 = inlined_call_operand.vmem [shape: f32[1,64], index: 2, kind: input, shape index: {}]
  %s3 = inlined_call_operand.vmem [shape: bf16[64,32], index: 3, kind: input, shape index: {}]
  %s4 = inlined_call_operand.vmem [shape: f32[1,32], index: 4, kind: input, shape index: {}]
  %s5 = inlined_call_operand.hbm [shape: f32[16,32], index: 5, kind: output, shape index: {}]
  %s6 = sld [smem:[#allocation0]]
  $region30: #{_mlp_forward_impl.1} parent=0
    _
  %s8 = ssub.s32 1, %s6
  %s9 = scalar_select 0, %s8, %s6
  $region1: #{_mlp_forward_impl.1} parent=0
    #allocation2 [shape = 'u8[8192]{0}', space=vmem, size = 0x2000, scoped, tag = 'output window, operand 0, single buffered']
    #allocation3 [shape = 's32[1]{0}', space=sflag, size = 0x4, scoped, tag = 'scoped memory for _mlp_forward_impl.1']
    %10 = vsyncpa [#allocation3], 0
    // Predicated region
    $region2: #{_mlp_forward_impl.1} parent=1 // pred_check
      _
    $region3: #{_mlp_forward_impl.1} parent=1 // pred_check_branch
      %12 = sbr.rel (0) target = $region5
    $region4: #{_mlp_forward_impl.1} parent=1 // pred_region
      _
    $region5: #{_mlp_forward_impl.1} parent=1 // pred_fallthru
      _
    // Predicated region
    $region6: #{_mlp_forward_impl.1} parent=1 // pred_check
      _
    $region7: #{_mlp_forward_impl.1} parent=1 // pred_check_branch
      %14 = sbr.rel (0) target = $region9
    $region8: #{_mlp_forward_impl.1} parent=1 // pred_region
      _
    $region9: #{_mlp_forward_impl.1} parent=1 // pred_fallthru
      _
    // Predicated region
    $region10: #{_mlp_forward_impl.1} parent=1 // pred_check
      _
    $region11: #{_mlp_forward_impl.1} parent=1 // pred_check_branch
      %16 = sbr.rel (0) target = $region13
    $region12: #{_mlp_forward_impl.1} parent=1 // pred_region
      _
    $region13: #{_mlp_forward_impl.1} parent=1 // pred_fallthru
      _
    // Predicated region
    $region14: #{_mlp_forward_impl.1} parent=1 // pred_check
      _
    $region15: #{_mlp_forward_impl.1} parent=1 // pred_check_branch
      %18 = sbr.rel (0) target = $region17
    $region16: #{_mlp_forward_impl.1} parent=1 // pred_region
      _
    $region17: #{_mlp_forward_impl.1} parent=1 // pred_fallthru
      _
    // Predicated region
    $region18: #{_mlp_forward_impl.1} parent=1 // pred_check
      _
    $region19: #{_mlp_forward_impl.1} parent=1 // pred_check_branch
      %20 = sbr.rel (0) target = $region21
    $region20: #{_mlp_forward_impl.1} parent=1 // pred_region
      _
    $region21: #{_mlp_forward_impl.1} parent=1 // pred_fallthru
      _
    %v22 = vld [vmem:[%s0] sm:$0xff]
    %v23 = vld [vmem:[%s0 + $0x8] sm:$0xff]
    %v24 = vpack.c.bf16 %v23, %v22
    %v25 = vld [vmem:[%s1] sm:$0xf]
    %v26 = vld [vmem:[%s1 + $0x4] sm:$0xf]
    %v27 = vld [vmem:[%s1 + $0x8] sm:$0xf]
    %v28 = vld [vmem:[%s1 + $0xc] sm:$0xf]
    %v29 = vld [vmem:[%s2] sm:$0x1]
    %v31 = vlaneseq
    %v32 = vshrl.u32 %v31, 7
    %v33 = vsub.s32 0, %v32
    %v34 = vrot.slane %v29, %v33
    %v40 = vunpack.c.l.b16 %v25
    %v41 = vunpack.c.l.b16 %v26
    %v42 = vunpack.c.l.b16 %v27
    %v43 = vunpack.c.l.b16 %v28
    %v44 = vpack.c.b16 %v41, %v40
    %v45 = vpack.c.b16 %v43, %v42
    %vm48 = vcmask 261120
    %v50 = vsel %vm48, %v24, 0
    %52 = vmatprep.subr.bf16.mxu0 0
    %53 = vmatpush1.bf16.msra.mxu0 %v44
    %54 = vmatprep.subr.bf16.mxu0 0
    %55 = vmatpush1.bf16.msra.mxu0 %v45
    %56 = vmatprep.subr.bf16.mxu0 0
    %57 = vmatpush1.bf16.msra.mxu0 0
    %58 = vmatprep.subr.bf16.mxu0 0
    %59 = vmatpush1.bf16.msra.mxu0 0
    %60 = vmatprep.subr.bf16.mxu0 0
    %61 = vmatpush1.bf16.msra.mxu0 0
    %62 = vmatprep.subr.bf16.mxu0 0
    %63 = vmatpush1.bf16.msra.mxu0 0
    %64 = vmatprep.subr.bf16.mxu0 0
    %65 = vmatpush1.bf16.msra.mxu0 0
    %66 = vmatprep.subr.bf16.mxu0 0
    %67 = vmatpush1.bf16.msra.mxu0 0
    %68 = vmatprep.subr.bf16.mxu0 0
    %69 = vmatpush1.bf16.msra.mxu0 0
    %70 = vmatprep.subr.bf16.mxu0 0
    %71 = vmatpush1.bf16.msra.mxu0 0
    %72 = vmatprep.subr.bf16.mxu0 0
    %73 = vmatpush1.bf16.msra.mxu0 0
    %74 = vmatprep.subr.bf16.mxu0 0
    %75 = vmatpush1.bf16.msra.mxu0 0
    %76 = vmatprep.subr.bf16.mxu0 0
    %77 = vmatpush1.bf16.msra.mxu0 0
    %78 = vmatprep.subr.bf16.mxu0 0
    %79 = vmatpush1.bf16.msra.mxu0 0
    %80 = vmatprep.subr.bf16.mxu0 0
    %81 = vmatpush1.bf16.msra.mxu0 0
    %82 = vmatprep.subr.bf16.mxu0 0
    %83 = vmatpush1.bf16.msra.mxu0 0
    %84 = vmatprep.mubr.bf16.mxu0 0
    %85 = vmatmul.mubr.bf16.gmra.mrb[0].mxu0 %v50
    %v86 = vpop.f32.mrb[0].mxu0
    %v87 = vadd.f32 %v34, %v86
    %v88 = vpop.f32.mrb[0].mxu0
    %v89 = vpop.f32.mrb[0].mxu0
    %v90 = vadd.f32 %v34, %v89
    %v91 = vpop.f32.mrb[0].mxu0
    %92 = vdwg.mxu0
    %v93 = vmul.f32 %v87, 0.5
    %v94 = vmul.f32 %v90, 0.5
    %v95 = vmul.f32 %v87, 0.70710677
    %v96 = vmul.f32 %v90, 0.70710677
    %v97 = verf.f32.pop %v95
    %v98 = verf.f32.pop %v96
    %v99 = vadd.f32 %v97, 1.0
    %v100 = vadd.f32 %v98, 1.0
    %v101 = vmul.f32 %v93, %v99
    %v102 = vmul.f32 %v94, %v100
    %v103 = vpack.c.bf16 %v102, %v101
    %v104 = vld [vmem:[%s3] sm:$0xf]
    %v105 = vld [vmem:[%s3 + $0x4] sm:$0xf]
    %v106 = vld [vmem:[%s3 + $0x8] sm:$0xf]
    %v107 = vld [vmem:[%s3 + $0xc] sm:$0xf]
    %v108 = vld [vmem:[%s3 + $0x10] sm:$0xf]
    %v109 = vld [vmem:[%s3 + $0x14] sm:$0xf]
    %v110 = vld [vmem:[%s3 + $0x18] sm:$0xf]
    %v111 = vld [vmem:[%s3 + $0x1c] sm:$0xf]
    %v112 = vld [vmem:[%s4] sm:$0x1]
    %v114 = vlaneseq
    %v115 = vshrl.u32 %v114, 7
    %v116 = vsub.s32 0, %v115
    %v117 = vrot.slane %v112, %v116
    %v127 = vunpack.c.l.b16 %v104
    %v128 = vunpack.c.l.b16 %v105
    %v129 = vunpack.c.l.b16 %v106
    %v130 = vunpack.c.l.b16 %v107
    %v131 = vunpack.c.l.b16 %v108
    %v132 = vunpack.c.l.b16 %v109
    %v133 = vunpack.c.l.b16 %v110
    %v134 = vunpack.c.l.b16 %v111
    %v135 = vpack.c.b16 %v128, %v127
    %v136 = vpack.c.b16 %v130, %v129
    %v137 = vpack.c.b16 %v132, %v131
    %v138 = vpack.c.b16 %v134, %v133
    %vm143 = vcmask 523264
    %v145 = vsel %vm143, %v103, 0
    %147 = vmatprep.subr.bf16.mxu0 0
    %148 = vmatpush1.bf16.msra.mxu0 %v135
    %149 = vmatprep.subr.bf16.mxu0 0
    %150 = vmatpush1.bf16.msra.mxu0 %v136
    %151 = vmatprep.subr.bf16.mxu0 0
    %152 = vmatpush1.bf16.msra.mxu0 %v137
    %153 = vmatprep.subr.bf16.mxu0 0
    %154 = vmatpush1.bf16.msra.mxu0 %v138
    %155 = vmatprep.subr.bf16.mxu0 0
    %156 = vmatpush1.bf16.msra.mxu0 0
    %157 = vmatprep.subr.bf16.mxu0 0
    %158 = vmatpush1.bf16.msra.mxu0 0
    %159 = vmatprep.subr.bf16.mxu0 0
    %160 = vmatpush1.bf16.msra.mxu0 0
    %161 = vmatprep.subr.bf16.mxu0 0
    %162 = vmatpush1.bf16.msra.mxu0 0
    %163 = vmatprep.subr.bf16.mxu0 0
    %164 = vmatpush1.bf16.msra.mxu0 0
    %165 = vmatprep.subr.bf16.mxu0 0
    %166 = vmatpush1.bf16.msra.mxu0 0
    %167 = vmatprep.subr.bf16.mxu0 0
    %168 = vmatpush1.bf16.msra.mxu0 0
    %169 = vmatprep.subr.bf16.mxu0 0
    %170 = vmatpush1.bf16.msra.mxu0 0
    %171 = vmatprep.subr.bf16.mxu0 0
    %172 = vmatpush1.bf16.msra.mxu0 0
    %173 = vmatprep.subr.bf16.mxu0 0
    %174 = vmatpush1.bf16.msra.mxu0 0
    %175 = vmatprep.subr.bf16.mxu0 0
    %176 = vmatpush1.bf16.msra.mxu0 0
    %177 = vmatprep.subr.bf16.mxu0 0
    %178 = vmatpush1.bf16.msra.mxu0 0
    %179 = vmatprep.mubr.bf16.mxu0 0
    %180 = vmatmul.mubr.bf16.gmra.mrb[0].mxu0 %v145
    %v181 = vpop.f32.mrb[0].mxu0
    %v182 = vadd.f32 %v117, %v181
    %v183 = vpop.f32.mrb[0].mxu0
    %v184 = vpop.f32.mrb[0].mxu0
    %v185 = vadd.f32 %v117, %v184
    %v186 = vpop.f32.mrb[0].mxu0
    %187 = vdwg.mxu0
    %188 = vst.msk [vmem:[#allocation2] sm:$0xff] %vm48, %v182
    %189 = vst.msk [vmem:[#allocation2 + $0x8] sm:$0xff] %vm48, %v185
    // Predicated region
    $region22: #{_mlp_forward_impl.1} parent=1 // pred_check
      _
    $region23: #{_mlp_forward_impl.1} parent=1 // pred_check_branch
      %191 = sbr.rel (0) target = $region25
    $region24: #{_mlp_forward_impl.1} parent=1 // pred_region
      %s193 = ssub.s32 256, 256
      %194 = vsyncadd [#allocation3], %s193
      %s195 = sshll.u32 [#allocation2], 4
      %s196 = int_to_ptr.vmem [resolvable:$true] %s195
      %201 = dma.vmem_to_hbm [thread:$0]  %s196, 256, %s5, [#allocation3], 128, 128, 8
    $region25: #{_mlp_forward_impl.1} parent=1 // pred_fallthru
      _
    // Predicated region
    $region26: #{_mlp_forward_impl.1} parent=1 // pred_check
      _
    $region27: #{_mlp_forward_impl.1} parent=1 // pred_check_branch
      %203 = sbr.rel (0) target = $region29
    $region28: #{_mlp_forward_impl.1} parent=1 // pred_region
      %204 = dma.done [#allocation3], 256
    $region29: #{_mlp_forward_impl.1} parent=1 // pred_fallthru
      _
    %205 = vsyncpa [#allocation3], 1

// kernel: _mlp_forward_impl.1
$region0: #{_mlp_forward_impl.1}
  #allocation0 [shape = 'u32[]', space=smem, size = 0x4, offset = 0x4, fixed_abs, tag = 'smem constant byte address 0x4 - core index']
  #allocation1 [shape = 'u32[144,128]{1,0:T(1,128)}', space=vmem, size = 0x12000, scoped, tag = 'internal scratch']
  %s0 = inlined_call_operand.vmem [shape: f32[16,32], index: 0, kind: input, shape index: {}]
  %s1 = inlined_call_operand.vmem [shape: bf16[32,64], index: 1, kind: input, shape index: {}]
  %s2 = inlined_call_operand.vmem [shape: f32[1,64], index: 2, kind: input, shape index: {}]
  %s3 = inlined_call_operand.vmem [shape: bf16[64,32], index: 3, kind: input, shape index: {}]
  %s4 = inlined_call_operand.vmem [shape: f32[1,32], index: 4, kind: input, shape index: {}]
  %s5 = inlined_call_operand.hbm [shape: f32[16,32], index: 5, kind: output, shape index: {}]
  %s6 = sld [smem:[#allocation0]]
  $region30: #{_mlp_forward_impl.1} parent=0
    _
  %s8 = ssub.s32 1, %s6
  %s9 = scalar_select 0, %s8, %s6
  $region1: #{_mlp_forward_impl.1} parent=0
    #allocation2 [shape = 'u8[8192]{0}', space=vmem, size = 0x2000, scoped, tag = 'output window, operand 0, single buffered']
    #allocation3 [shape = 's32[1]{0}', space=sflag, size = 0x4, scoped, tag = 'scoped memory for _mlp_forward_impl.1']
    %10 = vsyncpa [#allocation3], 0
    // Predicated region
    $region2: #{_mlp_forward_impl.1} parent=1 // pred_check
      _
    $region3: #{_mlp_forward_impl.1} parent=1 // pred_check_branch
      %12 = sbr.rel (0) target = $region5
    $region4: #{_mlp_forward_impl.1} parent=1 // pred_region
      _
    $region5: #{_mlp_forward_impl.1} parent=1 // pred_fallthru
      _
    // Predicated region
    $region6: #{_mlp_forward_impl.1} parent=1 // pred_check
      _
    $region7: #{_mlp_forward_impl.1} parent=1 // pred_check_branch
      %14 = sbr.rel (0) target = $region9
    $region8: #{_mlp_forward_impl.1} parent=1 // pred_region
      _
    $region9: #{_mlp_forward_impl.1} parent=1 // pred_fallthru
      _
    // Predicated region
    $region10: #{_mlp_forward_impl.1} parent=1 // pred_check
      _
    $region11: #{_mlp_forward_impl.1} parent=1 // pred_check_branch
      %16 = sbr.rel (0) target = $region13
    $region12: #{_mlp_forward_impl.1} parent=1 // pred_region
      _
    $region13: #{_mlp_forward_impl.1} parent=1 // pred_fallthru
      _
    // Predicated region
    $region14: #{_mlp_forward_impl.1} parent=1 // pred_check
      _
    $region15: #{_mlp_forward_impl.1} parent=1 // pred_check_branch
      %18 = sbr.rel (0) target = $region17
    $region16: #{_mlp_forward_impl.1} parent=1 // pred_region
      _
    $region17: #{_mlp_forward_impl.1} parent=1 // pred_fallthru
      _
    // Predicated region
    $region18: #{_mlp_forward_impl.1} parent=1 // pred_check
      _
    $region19: #{_mlp_forward_impl.1} parent=1 // pred_check_branch
      %20 = sbr.rel (0) target = $region21
    $region20: #{_mlp_forward_impl.1} parent=1 // pred_region
      _
    $region21: #{_mlp_forward_impl.1} parent=1 // pred_fallthru
      _
    %v22 = vld [vmem:[%s0] sm:$0xff]
    %v23 = vld [vmem:[%s0 + $0x8] sm:$0xff]
    %v24 = vpack.c.bf16 %v23, %v22
    %v25 = vld [vmem:[%s1] sm:$0xf]
    %v26 = vld [vmem:[%s1 + $0x4] sm:$0xf]
    %v27 = vld [vmem:[%s1 + $0x8] sm:$0xf]
    %v28 = vld [vmem:[%s1 + $0xc] sm:$0xf]
    %v29 = vld [vmem:[%s2] sm:$0x1]
    %v31 = vlaneseq
    %v32 = vshrl.u32 %v31, 7
    %v33 = vsub.s32 0, %v32
    %v34 = vrot.slane %v29, %v33
    %v40 = vunpack.c.l.b16 %v25
    %v41 = vunpack.c.l.b16 %v26
    %v42 = vunpack.c.l.b16 %v27
    %v43 = vunpack.c.l.b16 %v28
    %v44 = vpack.c.b16 %v41, %v40
    %v45 = vpack.c.b16 %v43, %v42
    %vm48 = vcmask 261120
    %v50 = vsel %vm48, %v24, 0
    %52 = vmatprep.subr.bf16.mxu0 0
    %53 = vmatpush1.bf16.msra.mxu0 %v44
    %54 = vmatprep.subr.bf16.mxu0 0
    %55 = vmatpush1.bf16.msra.mxu0 %v45
    %56 = vmatprep.subr.bf16.mxu0 0
    %57 = vmatpush1.bf16.msra.mxu0 0
    %58 = vmatprep.subr.bf16.mxu0 0
    %59 = vmatpush1.bf16.msra.mxu0 0
    %60 = vmatprep.subr.bf16.mxu0 0
    %61 = vmatpush1.bf16.msra.mxu0 0
    %62 = vmatprep.subr.bf16.mxu0 0
    %63 = vmatpush1.bf16.msra.mxu0 0
    %64 = vmatprep.subr.bf16.mxu0 0
    %65 = vmatpush1.bf16.msra.mxu0 0
    %66 = vmatprep.subr.bf16.mxu0 0
    %67 = vmatpush1.bf16.msra.mxu0 0
    %68 = vmatprep.subr.bf16.mxu0 0
    %69 = vmatpush1.bf16.msra.mxu0 0
    %70 = vmatprep.subr.bf16.mxu0 0
    %71 = vmatpush1.bf16.msra.mxu0 0
    %72 = vmatprep.subr.bf16.mxu0 0
    %73 = vmatpush1.bf16.msra.mxu0 0
    %74 = vmatprep.subr.bf16.mxu0 0
    %75 = vmatpush1.bf16.msra.mxu0 0
    %76 = vmatprep.subr.bf16.mxu0 0
    %77 = vmatpush1.bf16.msra.mxu0 0
    %78 = vmatprep.subr.bf16.mxu0 0
    %79 = vmatpush1.bf16.msra.mxu0 0
    %80 = vmatprep.subr.bf16.mxu0 0
    %81 = vmatpush1.bf16.msra.mxu0 0
    %82 = vmatprep.subr.bf16.mxu0 0
    %83 = vmatpush1.bf16.msra.mxu0 0
    %84 = vmatprep.mubr.bf16.mxu0 0
    %85 = vmatmul.mubr.bf16.gmra.mrb[0].mxu0 %v50
    %v86 = vpop.f32.mrb[0].mxu0
    %v87 = vadd.f32 %v34, %v86
    %v88 = vpop.f32.mrb[0].mxu0
    %v89 = vpop.f32.mrb[0].mxu0
    %v90 = vadd.f32 %v34, %v89
    %v91 = vpop.f32.mrb[0].mxu0
    %92 = vdwg.mxu0
    %v93 = vmul.f32 %v87, 0.5
    %v94 = vmul.f32 %v90, 0.5
    %v95 = vmul.f32 %v87, 0.70710677
    %v96 = vmul.f32 %v90, 0.70710677
    %v97 = verf.f32.pop %v95
    %v98 = verf.f32.pop %v96
    %v99 = vadd.f32 %v97, 1.0
    %v100 = vadd.f32 %v98, 1.0
    %v101 = vmul.f32 %v93, %v99
    %v102 = vmul.f32 %v94, %v100
    %v103 = vpack.c.bf16 %v102, %v101
    %v104 = vld [vmem:[%s3] sm:$0xf]
    %v105 = vld [vmem:[%s3 + $0x4] sm:$0xf]
    %v106 = vld [vmem:[%s3 + $0x8] sm:$0xf]
    %v107 = vld [vmem:[%s3 + $0xc] sm:$0xf]
    %v108 = vld [vmem:[%s3 + $0x10] sm:$0xf]
    %v109 = vld [vmem:[%s3 + $0x14] sm:$0xf]
    %v110 = vld [vmem:[%s3 + $0x18] sm:$0xf]
    %v111 = vld [vmem:[%s3 + $0x1c] sm:$0xf]
    %v112 = vld [vmem:[%s4] sm:$0x1]
    %v114 = vlaneseq
    %v115 = vshrl.u32 %v114, 7
    %v116 = vsub.s32 0, %v115
    %v117 = vrot.slane %v112, %v116
    %v127 = vunpack.c.l.b16 %v104
    %v128 = vunpack.c.l.b16 %v105
    %v129 = vunpack.c.l.b16 %v106
    %v130 = vunpack.c.l.b16 %v107
    %v131 = vunpack.c.l.b16 %v108
    %v132 = vunpack.c.l.b16 %v109
    %v133 = vunpack.c.l.b16 %v110
    %v134 = vunpack.c.l.b16 %v111
    %v135 = vpack.c.b16 %v128, %v127
    %v136 = vpack.c.b16 %v130, %v129
    %v137 = vpack.c.b16 %v132, %v131
    %v138 = vpack.c.b16 %v134, %v133
    %vm143 = vcmask 523264
    %v145 = vsel %vm143, %v103, 0
    %147 = vmatprep.subr.bf16.mxu0 0
    %148 = vmatpush1.bf16.msra.mxu0 %v135
    %149 = vmatprep.subr.bf16.mxu0 0
    %150 = vmatpush1.bf16.msra.mxu0 %v136
    %151 = vmatprep.subr.bf16.mxu0 0
    %152 = vmatpush1.bf16.msra.mxu0 %v137
    %153 = vmatprep.subr.bf16.mxu0 0
    %154 = vmatpush1.bf16.msra.mxu0 %v138
    %155 = vmatprep.subr.bf16.mxu0 0
    %156 = vmatpush1.bf16.msra.mxu0 0
    %157 = vmatprep.subr.bf16.mxu0 0
    %158 = vmatpush1.bf16.msra.mxu0 0
    %159 = vmatprep.subr.bf16.mxu0 0
    %160 = vmatpush1.bf16.msra.mxu0 0
    %161 = vmatprep.subr.bf16.mxu0 0
    %162 = vmatpush1.bf16.msra.mxu0 0
    %163 = vmatprep.subr.bf16.mxu0 0
    %164 = vmatpush1.bf16.msra.mxu0 0
    %165 = vmatprep.subr.bf16.mxu0 0
    %166 = vmatpush1.bf16.msra.mxu0 0
    %167 = vmatprep.subr.bf16.mxu0 0
    %168 = vmatpush1.bf16.msra.mxu0 0
    %169 = vmatprep.subr.bf16.mxu0 0
    %170 = vmatpush1.bf16.msra.mxu0 0
    %171 = vmatprep.subr.bf16.mxu0 0
    %172 = vmatpush1.bf16.msra.mxu0 0
    %173 = vmatprep.subr.bf16.mxu0 0
    %174 = vmatpush1.bf16.msra.mxu0 0
    %175 = vmatprep.subr.bf16.mxu0 0
    %176 = vmatpush1.bf16.msra.mxu0 0
    %177 = vmatprep.subr.bf16.mxu0 0
    %178 = vmatpush1.bf16.msra.mxu0 0
    %179 = vmatprep.mubr.bf16.mxu0 0
    %180 = vmatmul.mubr.bf16.gmra.mrb[0].mxu0 %v145
    %v181 = vpop.f32.mrb[0].mxu0
    %v182 = vadd.f32 %v117, %v181
    %v183 = vpop.f32.mrb[0].mxu0
    %v184 = vpop.f32.mrb[0].mxu0
    %v185 = vadd.f32 %v117, %v184
    %v186 = vpop.f32.mrb[0].mxu0
    %187 = vdwg.mxu0
    %188 = vst.msk [vmem:[#allocation2] sm:$0xff] %vm48, %v182
    %189 = vst.msk [vmem:[#allocation2 + $0x8] sm:$0xff] %vm48, %v185
    // Predicated region
    $region22: #{_mlp_forward_impl.1} parent=1 // pred_check
      _
    $region23: #{_mlp_forward_impl.1} parent=1 // pred_check_branch
      %191 = sbr.rel (0) target = $region25
    $region24: #{_mlp_forward_impl.1} parent=1 // pred_region
      %s193 = ssub.s32 256, 256
      %194 = vsyncadd [#allocation3], %s193
      %s195 = sshll.u32 [#allocation2], 4
      %s196 = int_to_ptr.vmem [resolvable:$true] %s195
      %201 = dma.vmem_to_hbm [thread:$0]  %s196, 256, %s5, [#allocation3], 128, 128, 8
    $region25: #{_mlp_forward_impl.1} parent=1 // pred_fallthru
      _
    // Predicated region
    $region26: #{_mlp_forward_impl.1} parent=1 // pred_check
      _
    $region27: #{_mlp_forward_impl.1} parent=1 // pred_check_branch
      %203 = sbr.rel (0) target = $region29
    $region28: #{_mlp_forward_impl.1} parent=1 // pred_region
      %204 = dma.done [#allocation3], 256
    $region29: #{_mlp_forward_impl.1} parent=1 // pred_fallthru
      _
    %205 = vsyncpa [#allocation3], 1

</llo_original>
